<compile_context>
chip_gen: v5e
topology: v5e:2x2
jax: 0.10.0
libtpu: 0.0.40
codegen_flags: <defaults>
</compile_context>

<pallas_src>
import math

import jax
import jax.numpy as jnp
from jax.experimental import pallas as pl
from jax.experimental.pallas import tpu as pltpu


# ----------------------------- helpers --------------------------------------

def _round_up(v, m):
    return ((v + m - 1) // m) * m


def _sublane_multiple(dtype):
    # f32 -> 8 rows / vreg, bf16 -> 16, int8/fp8 -> 32 (sub-32-bit packs sublanes).
    return max(8, 32 // jnp.dtype(dtype).itemsize)


def _vmem_capacity_bytes():
    try:
        cap = int(pltpu.get_tpu_info().vmem_capacity_bytes)
        if cap > 0:
            return cap
    except Exception:
        pass
    return 64 << 20  # conservative fallback: v7x per-TensorCore VMEM


def _multi_tensorcore():
    # v7x has 2 TensorCores/chip; v4/v5p megacore also shard "parallel" axes.
    try:
        kind = jax.devices()[0].device_kind.lower()
        return ("v7" in kind) or ("v4" in kind) or ("v5p" in kind)
    except Exception:
        return False


def _pick_m_tile(M, target, sub):
    """Tile for the M axis.  Prefer a divisor of round_up(M, sub) so no extra
    activation pad-copy is materialized; fall back to padding only when the
    best divisor would be tiny."""
    Ma = _round_up(M, sub)
    tgt = max(sub, min((target // sub) * sub, Ma))
    t = tgt
    while Ma % t:
        t -= sub
    if t == Ma or 2 * t >= tgt:
        return t, Ma
    return tgt, _round_up(M, tgt)


def _pick_div_tile(ext, target, align):
    """Largest `align`-multiple tile <= target that divides `ext` (which is
    already an `align` multiple — the prepared weight dims)."""
    tgt = max(align, min((target // align) * align, ext))
    t = tgt
    while ext % t:
        t -= align
    return t


def _select_tiles(M, Kp, Np, tm_t, tn_t, tk_t, sub,
                  x_item, w_item, o_item, needs_acc, has_bias, budget):
    """Pick (tm, tn, tk, Mp, working_set_bytes), shrinking targets until the
    double-buffered working set fits the per-generation VMEM budget."""
    tm_t = max(sub, int(tm_t))
    tn_t = max(128, int(tn_t))
    tk_t = max(128, int(tk_t))
    while True:
        tm, Mp = _pick_m_tile(M, tm_t, sub)
        tk = _pick_div_tile(Kp, tk_t, 128)
        tn = _pick_div_tile(Np, tn_t, 128)
        ws = (2 * tm * tk * x_item            # x tile, double buffered
              + 2 * tk * tn * w_item          # w tile, double buffered
              + 2 * tm * tn * o_item          # out tile, double buffered
              + (tm * tn * 4 if needs_acc else 0)
              + (2 * tn * 4 if has_bias else 0))
        if ws <= budget or (tm_t <= sub and tn_t <= 128 and tk_t <= 128):
            return tm, tn, tk, Mp, ws
        # Shrink the largest target and retry.
        if tk_t >= max(tm_t, tn_t) and tk_t > 128:
            tk_t = max(128, tk_t // 2)
        elif tn_t >= tm_t and tn_t > 128:
            tn_t = max(128, tn_t // 2)
        else:
            tm_t = max(sub, tm_t // 2)


# ----------------------------- kernels --------------------------------------
# x_ref: (tm, tk)  w_ref: (tk, tn)  b_ref: (1, tn) f32  o_ref: (tm, tn)
# acc_ref: (tm, tn) f32 (only for low-precision outputs).

def _mm_f32_kernel(x_ref, w_ref, o_ref):
    k = pl.program_id(2)

    @pl.when(k == 0)
    def _():
        o_ref[...] = jnp.zeros_like(o_ref)

    o_ref[...] += jnp.dot(x_ref[...], w_ref[...],
                          preferred_element_type=jnp.float32)


def _mm_f32_bias_kernel(x_ref, w_ref, b_ref, o_ref):
    k = pl.program_id(2)

    @pl.when(k == 0)
    def _():
        o_ref[...] = pl.broadcast_to(b_ref[...], o_ref.shape)

    o_ref[...] += jnp.dot(x_ref[...], w_ref[...],
                          preferred_element_type=jnp.float32)


def _mm_acc_kernel(x_ref, w_ref, o_ref, acc_ref):
    k = pl.program_id(2)

    @pl.when(k == 0)
    def _():
        acc_ref[...] = jnp.zeros_like(acc_ref)

    acc_ref[...] += jnp.dot(x_ref[...], w_ref[...],
                            preferred_element_type=jnp.float32)

    @pl.when(k == pl.num_programs(2) - 1)
    def _():
        o_ref[...] = acc_ref[...].astype(o_ref.dtype)


def _mm_acc_bias_kernel(x_ref, w_ref, b_ref, o_ref, acc_ref):
    k = pl.program_id(2)

    @pl.when(k == 0)
    def _():
        acc_ref[...] = pl.broadcast_to(b_ref[...], acc_ref.shape)

    acc_ref[...] += jnp.dot(x_ref[...], w_ref[...],
                            preferred_element_type=jnp.float32)

    @pl.when(k == pl.num_programs(2) - 1)
    def _():
        o_ref[...] = acc_ref[...].astype(o_ref.dtype)


# ----------------------------- wrapper --------------------------------------

def prepare_linear_weights(weights, bias=None, *, compute_dtype=None):
    """One-time parameter prep: transpose to MXU-native (K, N) and pad both
    dims to lane multiples of 128.  Do this once per parameter (not per call)."""
    out, inp = weights.shape
    Kp, Np = _round_up(inp, 128), _round_up(out, 128)
    wt = weights.T
    if compute_dtype is not None:
        wt = wt.astype(compute_dtype)
    if (Kp, Np) != (inp, out):
        wt = jnp.pad(wt, ((0, Kp - inp), (0, Np - out)))
    b = None
    if bias is not None:
        b = bias.astype(jnp.float32).reshape(1, out)   # bias stays f32
        if Np != out:
            b = jnp.pad(b, ((0, 0), (0, Np - out)))
    return {"wt": wt, "bias": b, "out": int(out), "inp": int(inp)}


def linear_pallas(x, weights=None, bias=None, *, params=None,
                  tm=512, tn=512, tk=1024, compute_dtype=None):
    """y = x @ weights.T (+ bias).  x: (..., inp), weights: (out, inp).

    Pass `params=prepare_linear_weights(weights, bias)` to hoist the one-time
    transpose/pad out of the per-call path (recommended for repeated calls)."""
    if params is None:
        assert weights is not None
        params = prepare_linear_weights(weights, bias, compute_dtype=compute_dtype)
    wt, b = params["wt"], params["bias"]
    out, inp = params["out"], params["inp"]
    Kp, Np = wt.shape
    assert x.shape[-1] == inp

    out_dtype = x.dtype
    lead_shape = x.shape[:-1]
    x2d = x.reshape(-1, inp)
    if compute_dtype is not None:
        x2d = x2d.astype(compute_dtype)
        if wt.dtype != jnp.dtype(compute_dtype):
            wt = wt.astype(compute_dtype)
    M = x2d.shape[0]

    sub = _sublane_multiple(x2d.dtype)
    needs_acc = jnp.dtype(out_dtype) != jnp.dtype(jnp.float32)
    has_bias = b is not None

    cap = _vmem_capacity_bytes()
    budget = int(cap * 0.6)
    x_item = jnp.dtype(x2d.dtype).itemsize
    w_item = jnp.dtype(wt.dtype).itemsize
    o_item = jnp.dtype(out_dtype).itemsize
    tm, tn, tk, Mp, ws = _select_tiles(M, Kp, Np, tm, tn, tk, sub,
                                       x_item, w_item, o_item,
                                       needs_acc, has_bias, budget)

    # v7x / megacore: guarantee >= 2 independent parallel output tiles so both
    # TensorCores get work (harmless no-op on single-TC parts).
    if _multi_tensorcore() and (Mp // tm) * (Np // tn) == 1:
        if tn % 256 == 0:
            tn //= 2
        elif tm % (2 * sub) == 0:
            tm //= 2

    # Per-call activation pad only when M/K are not already tile-aligned
    # (zero fill keeps the contraction exact).
    if (Mp, Kp) != (M, inp):
        x2d = jnp.pad(x2d, ((0, Mp - M), (0, Kp - inp)))

    grid = (Mp // tm, Np // tn, Kp // tk)

    x_spec = pl.BlockSpec((tm, tk), lambda i, j, k: (i, k))
    w_spec = pl.BlockSpec((tk, tn), lambda i, j, k: (k, j))
    o_spec = pl.BlockSpec((tm, tn), lambda i, j, k: (i, j))

    cost = pl.CostEstimate(
        flops=2 * Mp * Np * Kp,
        transcendentals=0,
        bytes_accessed=(Mp * Kp * x_item + Kp * Np * w_item + Mp * Np * o_item),
    )
    vmem_limit = int(min(cap * 0.9, max(32 << 20, ws + (8 << 20))))
    cparams = pltpu.CompilerParams(
        dimension_semantics=("parallel", "parallel", "arbitrary"),
        vmem_limit_bytes=vmem_limit,
    )

    if has_bias:
        kernel = _mm_acc_bias_kernel if needs_acc else _mm_f32_bias_kernel
        in_specs = [x_spec, w_spec, pl.BlockSpec((1, tn), lambda i, j, k: (0, j))]
        operands = (x2d, wt, b)
    else:
        kernel = _mm_acc_kernel if needs_acc else _mm_f32_kernel
        in_specs = [x_spec, w_spec]
        operands = (x2d, wt)
    scratch = [pltpu.VMEM((tm, tn), jnp.float32)] if needs_acc else []

    y2d = pl.pallas_call(
        kernel,
        out_shape=jax.ShapeDtypeStruct((Mp, Np), out_dtype),
        grid_spec=pltpu.PrefetchScalarGridSpec(
            num_scalar_prefetch=0,
            grid=grid,
            in_specs=in_specs,
            out_specs=o_spec,
            scratch_shapes=scratch,
        ),
        compiler_params=cparams,
        cost_estimate=cost,
    )(*operands)

    return y2d[:M, :out].reshape(*lead_shape, out)


def init_linear_params(key, inp, out, bias=False, is_out_proj=False,
                       dtype=jnp.float32):
    """Deterministic init mirroring Linear.reset_parameters."""
    wkey, _ = jax.random.split(key)
    if is_out_proj:
        w = 0.02 * jax.random.normal(wkey, (out, inp), dtype=jnp.float32)
    else:
        std = math.sqrt(2.0 / (inp + out))
        # trunc_normal_(mean=0, std=std, a=-3*std, b=3*std)
        w = std * jax.random.truncated_normal(
            wkey, -3.0, 3.0, (out, inp), dtype=jnp.float32)
    w = w.astype(dtype)
    b = jnp.zeros((out,), dtype=dtype) if bias else None
    return w, b


if __name__ == "__main__":
    key = jax.random.PRNGKey(0)
    k_x, k_w1, k_w2, k_x3, k_w3, k_w5 = jax.random.split(key, 6)

    # --- Case 1: small shape, no bias (module default), f32 -----------------
    batch, seq, inp, out = 2, 8, 32, 64
    x = jax.random.normal(k_x, (batch, seq, inp), dtype=jnp.float32)
    w, b = init_linear_params(k_w1, inp, out, bias=False, is_out_proj=False)
    y = linear_pallas(x, w, b)
    jax.block_until_ready(y)
    y_ref = jnp.dot(x, w.T, precision=jax.lax.Precision.HIGHEST)
    assert y.shape == (batch, seq, out)
    assert jnp.allclose(y, y_ref, atol=1e-4, rtol=1e-4)

    # --- Case 2: with bias, out-proj init; prepared-parameter path ----------
    w2, b2 = init_linear_params(k_w2, inp, out, bias=True, is_out_proj=True)
    b2 = b2 + 0.5  # make bias non-trivial
    prep2 = prepare_linear_weights(w2, b2)       # hoisted one-time prep
    y2 = linear_pallas(x, params=prep2)
    jax.block_until_ready(y2)
    y2_ref = jnp.dot(x, w2.T, precision=jax.lax.Precision.HIGHEST) + b2
    assert jnp.allclose(y2, y2_ref, atol=1e-4, rtol=1e-4)

    # --- Case 3: medium shape, explicit small tiles -> exercises the full
    #             M/N/K grid, K accumulation and the K-padding path ----------
    batch3, seq3, inp3, out3 = 3, 64, 200, 384   # M=192, Kp=256, Np=384
    x3 = jax.random.normal(k_x3, (batch3, seq3, inp3), dtype=jnp.float32)
    w3, b3 = init_linear_params(k_w3, inp3, out3, bias=True, is_out_proj=False)
    b3 = b3 + 0.25
    y3 = linear_pallas(x3, w3, b3, tm=64, tn=128, tk=128)  # grid = (3, 3, 2)
    jax.block_until_ready(y3)
    y3_ref = jnp.dot(x3, w3.T, precision=jax.lax.Precision.HIGHEST) + b3
    assert y3.shape == (batch3, seq3, out3)
    assert jnp.allclose(y3, y3_ref, atol=1e-4, rtol=1e-4)

    # --- Case 4: optional bf16 MXU compute path on f32 inputs ---------------
    y4 = linear_pallas(x, w, None, compute_dtype=jnp.bfloat16)
    jax.block_until_ready(y4)
    assert y4.dtype == jnp.float32
    assert jnp.allclose(y4, y_ref, atol=2e-2, rtol=2e-2)

    # --- Case 5: bf16 inputs/weights/output -> exercises the acc-scratch
    #             kernel and dtype-aware (16-row) sublane rounding -----------
    w5, _ = init_linear_params(k_w5, inp, out, bias=False, dtype=jnp.bfloat16)
    x5 = x.astype(jnp.bfloat16)
    y5 = linear_pallas(x5, w5, None)
    jax.block_until_ready(y5)
    assert y5.dtype == jnp.bfloat16
    y5_ref = jnp.dot(x5.astype(jnp.float32), w5.T.astype(jnp.float32),
                     precision=jax.lax.Precision.HIGHEST)
    assert jnp.allclose(y5.astype(jnp.float32), y5_ref, atol=2e-2, rtol=2e-2)

    print("KERNEL_OK")
</pallas_src>

<mosaic_0001>
module attributes {stable_mosaic.version = 11 : i64} {
  func.func @_mm_f32_kernel(%arg0: i32, %arg1: i32, %arg2: i32, %arg3: memref<16x128xf32, #tpu.memory_space<vmem>>, %arg4: memref<128x128xf32, #tpu.memory_space<vmem>>, %arg5: memref<16x128xf32, #tpu.memory_space<vmem>>) attributes {dimension_semantics = [#tpu.dimension_semantics<parallel>, #tpu.dimension_semantics<parallel>, #tpu.dimension_semantics<arbitrary>], iteration_bounds = array<i64: 1, 1, 1>, scalar_prefetch = 0 : i64, scratch_operands = 0 : i64, tpu.core_type = #tpu.core_type<tc>, window_params = [{transform_indices = @transform_0, window_bounds = array<i64: 16, 128>}, {transform_indices = @transform_1, window_bounds = array<i64: 128, 128>}, {transform_indices = @transform_2, window_bounds = array<i64: 16, 128>}]} {
    %c0_i32 = arith.constant 0 : i32
    %0 = arith.cmpi eq, %arg2, %c0_i32 : i32
    %1 = arith.extui %0 : i1 to i32
    %c0_i32_0 = arith.constant 0 : i32
    %2 = arith.cmpi ne, %1, %c0_i32_0 : i32
    scf.if %2 {
      %cst_8 = arith.constant 0.000000e+00 : f32
      %9 = vector.broadcast %cst_8 : f32 to vector<16x128xf32>
      %c0_9 = arith.constant 0 : index
      %c0_10 = arith.constant 0 : index
      %10 = vector.load %arg5[%c0_9, %c0_10] : memref<16x128xf32, #tpu.memory_space<vmem>>, vector<16x128xf32>
      tpu.vector_store %arg5[%c0_9, %c0_10], %9 {strides = array<i32>} : memref<16x128xf32, #tpu.memory_space<vmem>>, vector<16x128xf32>,
    } else {
    }
    %c0 = arith.constant 0 : index
    %c0_1 = arith.constant 0 : index
    %3 = vector.load %arg5[%c0, %c0_1] : memref<16x128xf32, #tpu.memory_space<vmem>>, vector<16x128xf32>
    %c0_2 = arith.constant 0 : index
    %c0_3 = arith.constant 0 : index
    %4 = vector.load %arg3[%c0_2, %c0_3] : memref<16x128xf32, #tpu.memory_space<vmem>>, vector<16x128xf32>
    %c0_4 = arith.constant 0 : index
    %c0_5 = arith.constant 0 : index
    %5 = vector.load %arg4[%c0_4, %c0_5] : memref<128x128xf32, #tpu.memory_space<vmem>>, vector<128x128xf32>
    %cst = arith.constant dense<0.000000e+00> : vector<16x128xf32>
    %6 = tpu.matmul %4, %5, %cst {dimension_numbers = #tpu.dot_dimension_numbers<[1], [0], [0], [1], [0, 0, 1, 1], [], []>} : vector<16x128xf32>, vector<128x128xf32>, vector<16x128xf32> -> vector<16x128xf32>
    %7 = arith.addf %3, %6 : vector<16x128xf32>
    %c0_6 = arith.constant 0 : index
    %c0_7 = arith.constant 0 : index
    %8 = vector.load %arg5[%c0_6, %c0_7] : memref<16x128xf32, #tpu.memory_space<vmem>>, vector<16x128xf32>
    tpu.vector_store %arg5[%c0_6, %c0_7], %7 {strides = array<i32>} : memref<16x128xf32, #tpu.memory_space<vmem>>, vector<16x128xf32>,
    return
  }
  func.func @transform_0(%arg0: i32, %arg1: i32, %arg2: i32) -> (i32, i32) {
    %c0_i32 = arith.constant 0 : i32
    return %arg0, %arg2 : i32, i32
  }
  func.func @transform_1(%arg0: i32, %arg1: i32, %arg2: i32) -> (i32, i32) {
    %c0_i32 = arith.constant 0 : i32
    return %arg2, %arg1 : i32, i32
  }
  func.func @transform_2(%arg0: i32, %arg1: i32, %arg2: i32) -> (i32, i32) {
    %c0_i32 = arith.constant 0 : i32
    return %arg0, %arg1 : i32, i32
  }
}

</mosaic_0001>

<llo_original>
// kernel: tpu_custom_call.1
$region0: #{tpu_custom_call.1}
  #allocation0 [shape = 'u32[]', space=smem, size = 0x4, offset = 0x4, fixed_abs, tag = 'smem constant byte address 0x4 - core index']
  #allocation1 [shape = 'u32[72,128]{1,0:T(1,128)}', space=vmem, size = 0x9000, scoped, tag = 'internal scratch']
  %s0 = inlined_call_operand.hbm [shape: f32[16,128], index: 0, kind: input, shape index: {}]
  %s1 = inlined_call_operand.hbm [shape: f32[128,128], index: 1, kind: input, shape index: {}]
  %s2 = inlined_call_operand.hbm [shape: f32[16,128], index: 2, kind: output, shape index: {}]
  %s3 = sld [smem:[#allocation0]]
  $region30: #{tpu_custom_call.1} parent=0
    _
  %s5 = ssub.s32 1, %s3
  %s6 = scalar_select 0, %s5, %s3
  $region1: #{tpu_custom_call.1} parent=0
    #allocation2 [shape = 'u8[8192]{0}', space=vmem, size = 0x2000, scoped, tag = 'input window, operand 0, single buffered']
    #allocation3 [shape = 's32[1]{0}', space=sflag, size = 0x4, scoped, tag = 'scoped memory for tpu_custom_call.1']
    #allocation4 [shape = 's32[1]{0}', space=sflag, size = 0x4, scoped, tag = 'scoped memory for tpu_custom_call.1']
    #allocation5 [shape = 'u8[65536]{0}', space=vmem, size = 0x10000, scoped, tag = 'input window, operand 1, single buffered']
    #allocation6 [shape = 's32[1]{0}', space=sflag, size = 0x4, scoped, tag = 'scoped memory for tpu_custom_call.1']
    #allocation7 [shape = 'u8[8192]{0}', space=vmem, size = 0x2000, scoped, tag = 'output window, operand 0, single buffered']
    %7 = vsyncpa [#allocation3], 0
    %8 = vsyncpa [#allocation6], 0
    %9 = vsyncpa [#allocation4], 0
    // Predicated region
    $region2: #{tpu_custom_call.1} parent=1 // pred_check
      _
    $region3: #{tpu_custom_call.1} parent=1 // pred_check_branch
      %11 = sbr.rel (0) target = $region5
    $region4: #{tpu_custom_call.1} parent=1 // pred_region
      %13 = vsyncadd [#allocation3], 0
      %s14 = sshll.u32 %s0, 4
      %s15 = int_to_ptr.hbm [resolvable:$true] %s14
      %s16 = sshll.u32 [#allocation2], 4
      %s17 = int_to_ptr.vmem [resolvable:$true] %s16
      %22 = dma.hbm_to_vmem [thread:$0]  %s15, 256, %s17, [#allocation3], 128, 128, 8
    $region5: #{tpu_custom_call.1} parent=1 // pred_fallthru
      _
    // Predicated region
    $region6: #{tpu_custom_call.1} parent=1 // pred_check
      _
    $region7: #{tpu_custom_call.1} parent=1 // pred_check_branch
      %24 = sbr.rel (0) target = $region9
    $region8: #{tpu_custom_call.1} parent=1 // pred_region
      %26 = vsyncadd [#allocation6], 0
      %s27 = sshll.u32 %s1, 4
      %s28 = int_to_ptr.hbm [resolvable:$true] %s27
      %s29 = sshll.u32 [#allocation5], 4
      %s30 = int_to_ptr.vmem [resolvable:$true] %s29
      %35 = dma.hbm_to_vmem [thread:$0]  %s28, 2048, %s30, [#allocation6], 128, 128, 8
    $region9: #{tpu_custom_call.1} parent=1 // pred_fallthru
      _
    // Predicated region
    $region10: #{tpu_custom_call.1} parent=1 // pred_check
      _
    $region11: #{tpu_custom_call.1} parent=1 // pred_check_branch
      %37 = sbr.rel (0) target = $region13
    $region12: #{tpu_custom_call.1} parent=1 // pred_region
      %39 = dma.done [#allocation3], 256
    $region13: #{tpu_custom_call.1} parent=1 // pred_fallthru
      _
    // Predicated region
    $region14: #{tpu_custom_call.1} parent=1 // pred_check
      _
    $region15: #{tpu_custom_call.1} parent=1 // pred_check_branch
      %41 = sbr.rel (0) target = $region17
    $region16: #{tpu_custom_call.1} parent=1 // pred_region
      %43 = dma.done [#allocation6], 2048
    $region17: #{tpu_custom_call.1} parent=1 // pred_fallthru
      _
    %p44 = scmp.eq.s32.totalorder 0, 0
    // Predicated region
    $region18: #{tpu_custom_call.1} parent=1 // pred_check
      %p45 = pneg %p44
    $region19: #{tpu_custom_call.1} parent=1 // pred_check_branch
      %47 = sbr.rel (%p45) target = $region21
    $region20: #{tpu_custom_call.1} parent=1 // pred_region
      %48 = vst [vmem:[#allocation7] sm:$0xff] 0.0
      %49 = vst [vmem:[#allocation7 + $0x8] sm:$0xff] 0.0
    $region21: #{tpu_custom_call.1} parent=1 // pred_fallthru
      _
    %v50 = vld [vmem:[#allocation7] sm:$0xff]
    %v51 = vld [vmem:[#allocation7 + $0x8] sm:$0xff]
    %v52 = vld [vmem:[#allocation2] sm:$0xff]
    %v53 = vld [vmem:[#allocation2 + $0x8] sm:$0xff]
    %v54 = vld [vmem:[#allocation5] sm:$0xff]
    %v55 = vld [vmem:[#allocation5 + $0x8] sm:$0xff]
    %v56 = vld [vmem:[#allocation5 + $0x10] sm:$0xff]
    %v57 = vld [vmem:[#allocation5 + $0x18] sm:$0xff]
    %v58 = vld [vmem:[#allocation5 + $0x20] sm:$0xff]
    %v59 = vld [vmem:[#allocation5 + $0x28] sm:$0xff]
    %v60 = vld [vmem:[#allocation5 + $0x30] sm:$0xff]
    %v61 = vld [vmem:[#allocation5 + $0x38] sm:$0xff]
    %v62 = vld [vmem:[#allocation5 + $0x40] sm:$0xff]
    %v63 = vld [vmem:[#allocation5 + $0x48] sm:$0xff]
    %v64 = vld [vmem:[#allocation5 + $0x50] sm:$0xff]
    %v65 = vld [vmem:[#allocation5 + $0x58] sm:$0xff]
    %v66 = vld [vmem:[#allocation5 + $0x60] sm:$0xff]
    %v67 = vld [vmem:[#allocation5 + $0x68] sm:$0xff]
    %v68 = vld [vmem:[#allocation5 + $0x70] sm:$0xff]
    %v69 = vld [vmem:[#allocation5 + $0x78] sm:$0xff]
    %70 = vmatpush.msra.mxu0 %v69
    %71 = vmatpush.msra.mxu0 %v68
    %72 = vmatpush.msra.mxu0 %v67
    %73 = vmatpush.msra.mxu0 %v66
    %74 = vmatpush.msra.mxu0 %v65
    %75 = vmatpush.msra.mxu0 %v64
    %76 = vmatpush.msra.mxu0 %v63
    %77 = vmatpush.msra.mxu0 %v62
    %78 = vmatpush.msra.mxu0 %v61
    %79 = vmatpush.msra.mxu0 %v60
    %80 = vmatpush.msra.mxu0 %v59
    %81 = vmatpush.msra.mxu0 %v58
    %82 = vmatpush.msra.mxu0 %v57
    %83 = vmatpush.msra.mxu0 %v56
    %84 = vmatpush.msra.mxu0 %v55
    %85 = vmatpush.msra.mxu0 %v54
    %86 = vmatmul.f32.gmra.mxu0 %v52
    %v87 = vpop.f32.mrf.mxu0
    %v88 = vadd.f32 0.0, %v87
    %89 = vmatmul.f32.gmra.mxu0 %v53
    %v90 = vpop.f32.mrf.mxu0
    %v91 = vadd.f32 0.0, %v90
    %92 = vdwg.mxu0
    %v93 = vadd.f32 %v50, %v88
    %v94 = vadd.f32 %v51, %v91
    %95 = vst [vmem:[#allocation7] sm:$0xff] %v93
    %96 = vst [vmem:[#allocation7 + $0x8] sm:$0xff] %v94
    // Predicated region
    $region22: #{tpu_custom_call.1} parent=1 // pred_check
      _
    $region23: #{tpu_custom_call.1} parent=1 // pred_check_branch
      %98 = sbr.rel (0) target = $region25
    $region24: #{tpu_custom_call.1} parent=1 // pred_region
      %100 = vsyncadd [#allocation4], 0
      %s101 = sshll.u32 [#allocation7], 4
      %s102 = int_to_ptr.vmem [resolvable:$true] %s101
      %s103 = sshll.u32 %s2, 4
      %s104 = int_to_ptr.hbm [resolvable:$true] %s103
      %109 = dma.vmem_to_hbm [thread:$0]  %s102, 256, %s104, [#allocation4], 128, 128, 8
    $region25: #{tpu_custom_call.1} parent=1 // pred_fallthru
      _
    // Predicated region
    $region26: #{tpu_custom_call.1} parent=1 // pred_check
      _
    $region27: #{tpu_custom_call.1} parent=1 // pred_check_branch
      %111 = sbr.rel (0) target = $region29
    $region28: #{tpu_custom_call.1} parent=1 // pred_region
      %113 = dma.done [#allocation4], 256
    $region29: #{tpu_custom_call.1} parent=1 // pred_fallthru
      _
    %114 = vsyncpa [#allocation3], 1
    %115 = vsyncpa [#allocation6], 1
    %116 = vsyncpa [#allocation4], 1

</llo_original>
